<compile_context>
chip_gen: v5e
topology: v5e:2x2
jax: 0.10.0
libtpu: 0.0.40
codegen_flags: <defaults>
</compile_context>

<pallas_src>
import functools

import jax
import jax.numpy as jnp
from jax import lax
from jax.experimental import pallas as pl
from jax.experimental.pallas import tpu as pltpu

NUM_BITS = 8
NUM_BINS = float(2 ** NUM_BITS - 1)  # 255.0
EPS = 1e-8
LANE = 128

TM_BIG = 1024                     # rows per block for the large two-pass path (512 KiB f32)
FUSED_MAX_ROWS = 2048             # <= 1 MiB f32 slab -> single fused kernel (safe on v5e/v7x VMEM)
FUSED_LIMIT_ELEMS = FUSED_MAX_ROWS * LANE


# ----------------------------------------------------------------------------- kernels


def _fused_quant_kernel(x_ref, o_ref, *, total):
    """Single-block fused min/max + fake-quantization (whole tensor in VMEM)."""
    x = x_ref[...].astype(jnp.float32)
    rows, lanes = x.shape
    if rows * lanes != total:
        # Ragged tail: mask padded elements out of the min/max (pad values are zeros).
        ridx = lax.broadcasted_iota(jnp.int32, (rows, lanes), 0)
        cidx = lax.broadcasted_iota(jnp.int32, (rows, lanes), 1)
        valid = (ridx * lanes + cidx) < total
        mn = jnp.min(jnp.where(valid, x, jnp.inf))
        mx = jnp.max(jnp.where(valid, x, -jnp.inf))
    else:
        mn = jnp.min(x)
        mx = jnp.max(x)

    mn = mn - EPS
    mx = mx + EPS
    scale = NUM_BINS / (mx - mn)            # scalar
    inv_scale = (mx - mn) / NUM_BINS        # scalar (hoisted; no per-element divide)
    y = jnp.round(jnp.clip((x - mn) * scale, 0.0, NUM_BINS))
    o_ref[...] = (y * inv_scale + mn).astype(o_ref.dtype)


def _minmax_kernel(x_ref, min_ref, max_ref, min_acc, max_acc, *, total, needs_mask):
    """Pass 1 (large tensors): elementwise min/max accumulation into VMEM scratch,
    single cross-lane reduction at the final grid step."""
    i = pl.program_id(0)

    @pl.when(i == 0)
    def _():
        min_acc[...] = jnp.full_like(min_acc, jnp.inf)
        max_acc[...] = jnp.full_like(max_acc, -jnp.inf)

    x = x_ref[...].astype(jnp.float32)
    rows, lanes = x.shape
    if needs_mask:
        ridx = lax.broadcasted_iota(jnp.int32, (rows, lanes), 0)
        cidx = lax.broadcasted_iota(jnp.int32, (rows, lanes), 1)
        idx = (i * rows + ridx) * lanes + cidx
        valid = idx < total
        x_min = jnp.where(valid, x, jnp.inf)
        x_max = jnp.where(valid, x, -jnp.inf)
    else:
        x_min = x
        x_max = x

    # Pure VPU work on the accumulation chain; hides under the input DMA.
    min_acc[...] = jnp.minimum(min_acc[...], x_min)
    max_acc[...] = jnp.maximum(max_acc[...], x_max)

    @pl.when(i == pl.num_programs(0) - 1)
    def _():
        min_ref[...] = jnp.broadcast_to(jnp.min(min_acc[...]), min_ref.shape)
        max_ref[...] = jnp.broadcast_to(jnp.max(max_acc[...]), max_ref.shape)


def _quantize_kernel(mn_ref, mx_ref, x_ref, o_ref):
    """Pass 2 (large tensors): elementwise fake-quantization given SMEM scalars."""
    mn = mn_ref[0] - EPS
    mx = mx_ref[0] + EPS
    scale = NUM_BINS / (mx - mn)
    inv_scale = (mx - mn) / NUM_BINS
    x = x_ref[...].astype(jnp.float32)
    y = jnp.round(jnp.clip((x - mn) * scale, 0.0, NUM_BINS))
    o_ref[...] = (y * inv_scale + mn).astype(o_ref.dtype)


# ----------------------------------------------------------------------------- wrapper


def quant_measure(x, fused_limit_elems=FUSED_LIMIT_ELEMS):
    """Pallas implementation of QuantMeasure.forward (stochastic=False, inplace=False)."""
    orig_shape = x.shape
    orig_dtype = x.dtype
    total = x.size
    flat = x.reshape(-1)

    if total <= fused_limit_elems:
        # ---- fused single-block path (typical activation sizes) ----
        block_elems = 8 * LANE
        pad = (-total) % block_elems
        if pad:
            flat = jnp.pad(flat, (0, pad))          # zeros; masked in-kernel
        rows = flat.size // LANE
        x2 = flat.reshape(rows, LANE)

        q2 = pl.pallas_call(
            functools.partial(_fused_quant_kernel, total=total),
            out_shape=jax.ShapeDtypeStruct((rows, LANE), orig_dtype),
            grid=(1,),
            in_specs=[pl.BlockSpec((rows, LANE), lambda i: (0, 0))],
            out_specs=pl.BlockSpec((rows, LANE), lambda i: (0, 0)),
            compiler_params=pltpu.CompilerParams(dimension_semantics=("arbitrary",)),
        )(x2)
    else:
        # ---- two-pass path for large tensors (1024x128 blocks) ----
        block_elems = TM_BIG * LANE
        pad = (-total) % block_elems
        if pad:
            flat = jnp.pad(flat, (0, pad))          # zeros; masked in-kernel
        rows = flat.size // LANE
        x2 = flat.reshape(rows, LANE)
        n_tiles = rows // TM_BIG
        needs_mask = pad != 0

        mn, mx = pl.pallas_call(
            functools.partial(_minmax_kernel, total=total, needs_mask=needs_mask),
            out_shape=(jax.ShapeDtypeStruct((1, 1), jnp.float32),
                       jax.ShapeDtypeStruct((1, 1), jnp.float32)),
            grid=(n_tiles,),
            in_specs=[pl.BlockSpec((TM_BIG, LANE), lambda i: (i, 0))],
            out_specs=(pl.BlockSpec((1, 1), lambda i: (0, 0)),
                       pl.BlockSpec((1, 1), lambda i: (0, 0))),
            scratch_shapes=[pltpu.VMEM((TM_BIG, LANE), jnp.float32),
                            pltpu.VMEM((TM_BIG, LANE), jnp.float32)],
            compiler_params=pltpu.CompilerParams(dimension_semantics=("arbitrary",)),
        )(x2)

        q2 = pl.pallas_call(
            _quantize_kernel,
            out_shape=jax.ShapeDtypeStruct((rows, LANE), orig_dtype),
            grid=(n_tiles,),
            in_specs=[pl.BlockSpec(memory_space=pltpu.SMEM),
                      pl.BlockSpec(memory_space=pltpu.SMEM),
                      pl.BlockSpec((TM_BIG, LANE), lambda i: (i, 0))],
            out_specs=pl.BlockSpec((TM_BIG, LANE), lambda i: (i, 0)),
            compiler_params=pltpu.CompilerParams(dimension_semantics=("parallel",)),
        )(mn.reshape(1), mx.reshape(1), x2)

    return q2.reshape(-1)[:total].reshape(orig_shape)


# ----------------------------------------------------------------------------- reference


def _reference(x):
    """Pure-JAX reference mirroring the PyTorch semantics."""
    xf = x.astype(jnp.float32)
    mn = jnp.min(xf) - EPS
    mx = jnp.max(xf) + EPS
    scale = NUM_BINS / (mx - mn)
    y = jnp.round(jnp.clip((xf - mn) * scale, 0.0, NUM_BINS))
    return (y / scale + mn).astype(x.dtype)


# TODO(synk): stochastic=True noise injection and inplace aliasing are not implemented
# (module defaults are stochastic=False, inplace=False, which this kernel reproduces).

if __name__ == "__main__":
    key = jax.random.PRNGKey(0)
    # NCHW activation tensor, like the PyTorch module would see from a conv.
    x = jax.random.normal(key, (2, 4, 16, 16), dtype=jnp.float32) * 3.0 + 0.5

    out = jax.block_until_ready(jax.jit(quant_measure)(x))
    ref = _reference(x)
    assert out.shape == x.shape and out.dtype == x.dtype
    assert jnp.allclose(out, ref, atol=1e-5, rtol=1e-5), "mismatch vs reference (fused path)"

    # Ragged size -> exercises the in-kernel tail masking of the fused path.
    x_ragged = jax.random.normal(jax.random.PRNGKey(1), (2, 3, 5, 7), dtype=jnp.float32) * 2.0 - 0.3
    out_r = jax.block_until_ready(jax.jit(quant_measure)(x_ragged))
    assert jnp.allclose(out_r, _reference(x_ragged), atol=1e-5, rtol=1e-5), \
        "mismatch vs reference (ragged fused path)"

    # Force the large-tensor two-pass path (small input, fused_limit_elems=0) to
    # validate both code paths on-device.
    out_2p = jax.block_until_ready(
        jax.jit(functools.partial(quant_measure, fused_limit_elems=0))(x))
    assert jnp.allclose(out_2p, ref, atol=1e-5, rtol=1e-5), "mismatch vs reference (two-pass path)"

    print("KERNEL_OK")
</pallas_src>

<mosaic_0001>
module attributes {stable_mosaic.version = 11 : i64} {
  func.func @_fused_quant_kernel(%arg0: i32, %arg1: memref<16x128xf32, #tpu.memory_space<vmem>>, %arg2: memref<16x128xf32, #tpu.memory_space<vmem>>) attributes {dimension_semantics = [#tpu.dimension_semantics<arbitrary>], iteration_bounds = array<i64: 1>, scalar_prefetch = 0 : i64, scratch_operands = 0 : i64, tpu.core_type = #tpu.core_type<tc>, window_params = [{pipeline_mode = #tpu.pipeline_mode<synchronous>, transform_indices = @transform_0, window_bounds = array<i64: 16, 128>}, {pipeline_mode = #tpu.pipeline_mode<synchronous>, transform_indices = @transform_1, window_bounds = array<i64: 16, 128>}]} {
    %c0 = arith.constant 0 : index
    %c0_0 = arith.constant 0 : index
    %0 = vector.load %arg1[%c0, %c0_0] : memref<16x128xf32, #tpu.memory_space<vmem>>, vector<16x128xf32>
    %1 = vector.shape_cast %0 : vector<16x128xf32> to vector<1x16x128xf32>
    %cst = arith.constant dense<0x7F800000> : vector<1xf32>
    %2 = vector.multi_reduction <minimumf>, %1, %cst [1, 2] : vector<1x16x128xf32> to vector<1xf32>
    %3 = vector.shape_cast %2 : vector<1xf32> to vector<1x1x1xf32>
    %4 = vector.extract %3[0, 0, 0] : f32 from vector<1x1x1xf32>
    %5 = vector.shape_cast %0 : vector<16x128xf32> to vector<1x16x128xf32>
    %cst_1 = arith.constant dense<0xFF800000> : vector<1xf32>
    %6 = vector.multi_reduction <maximumf>, %5, %cst_1 [1, 2] : vector<1x16x128xf32> to vector<1xf32>
    %7 = vector.shape_cast %6 : vector<1xf32> to vector<1x1x1xf32>
    %8 = vector.extract %7[0, 0, 0] : f32 from vector<1x1x1xf32>
    %cst_2 = arith.constant 9.99999993E-9 : f32
    %9 = arith.subf %4, %cst_2 : f32
    %cst_3 = arith.constant 9.99999993E-9 : f32
    %10 = arith.addf %8, %cst_3 : f32
    %11 = arith.subf %10, %9 : f32
    %cst_4 = arith.constant 2.550000e+02 : f32
    %12 = arith.divf %cst_4, %11 : f32
    %13 = arith.subf %10, %9 : f32
    %cst_5 = arith.constant 2.550000e+02 : f32
    %14 = arith.divf %13, %cst_5 : f32
    %15 = vector.broadcast %9 : f32 to vector<16x128xf32>
    %16 = arith.subf %0, %15 : vector<16x128xf32>
    %17 = vector.broadcast %12 : f32 to vector<16x128xf32>
    %18 = arith.mulf %16, %17 : vector<16x128xf32>
    %cst_6 = arith.constant 0.000000e+00 : f32
    %cst_7 = arith.constant 2.550000e+02 : f32
    %19 = vector.broadcast %cst_6 : f32 to vector<16x128xf32>
    %20 = arith.maximumf %19, %18 : vector<16x128xf32>
    %21 = vector.broadcast %cst_7 : f32 to vector<16x128xf32>
    %22 = arith.minimumf %21, %20 : vector<16x128xf32>
    %23 = math.roundeven %22 : vector<16x128xf32>
    %24 = vector.broadcast %14 : f32 to vector<16x128xf32>
    %25 = arith.mulf %23, %24 : vector<16x128xf32>
    %26 = vector.broadcast %9 : f32 to vector<16x128xf32>
    %27 = arith.addf %25, %26 : vector<16x128xf32>
    %c0_8 = arith.constant 0 : index
    %c0_9 = arith.constant 0 : index
    %28 = vector.load %arg2[%c0_8, %c0_9] : memref<16x128xf32, #tpu.memory_space<vmem>>, vector<16x128xf32>
    tpu.vector_store %arg2[%c0_8, %c0_9], %27 {strides = array<i32>} : memref<16x128xf32, #tpu.memory_space<vmem>>, vector<16x128xf32>,
    return
  }
  func.func @transform_0(%arg0: i32) -> (i32, i32) {
    %c0_i32 = arith.constant 0 : i32
    %c0_i32_0 = arith.constant 0 : i32
    %c0_i32_1 = arith.constant 0 : i32
    return %c0_i32, %c0_i32_0 : i32, i32
  }
  func.func @transform_1(%arg0: i32) -> (i32, i32) {
    %c0_i32 = arith.constant 0 : i32
    %c0_i32_0 = arith.constant 0 : i32
    %c0_i32_1 = arith.constant 0 : i32
    return %c0_i32, %c0_i32_0 : i32, i32
  }
}

</mosaic_0001>

<llo_original>
// kernel: quant_measure.1
$region0: #{quant_measure.1}
  #allocation0 [shape = 'u32[]', space=smem, size = 0x4, offset = 0x4, fixed_abs, tag = 'smem constant byte address 0x4 - core index']
  #allocation1 [shape = 'u32[72,128]{1,0:T(1,128)}', space=vmem, size = 0x9000, scoped, tag = 'internal scratch']
  %s0 = inlined_call_operand.vmem [shape: f32[16,128], index: 0, kind: input, shape index: {}]
  %s1 = inlined_call_operand.vmem [shape: f32[16,128], index: 1, kind: output, shape index: {}]
  %s2 = sld [smem:[#allocation0]]
  $region14: #{quant_measure.1} parent=0
    _
  %s4 = ssub.s32 1, %s2
  %s5 = scalar_select 0, %s4, %s2
  // Predicated region
  $region2: #{quant_measure.1} parent=0 // pred_check
    _
  $region3: #{quant_measure.1} parent=0 // pred_check_branch
    %7 = sbr.rel (0) target = $region5
  $region4: #{quant_measure.1} parent=0 // pred_region
    _
  $region5: #{quant_measure.1} parent=0 // pred_fallthru
    _
  %v8 = vld [vmem:[%s0] sm:$0xff]
  %v9 = vld [vmem:[%s0 + $0x8] sm:$0xff]
  %v10 = vmin.f32 %v8, %v9
  %11 = vmin.xlane.f32.xlu0 %v10
  %v12 = vpop.xlane.xlu0 %11
  %v13 = vrot.slane %v12, 4
  %v14 = vmin.f32 %v12, %v13
  %v15 = vrot.slane %v14, 2
  %v16 = vmin.f32 %v14, %v15
  %v17 = vrot.slane %v16, 1
  %v18 = vmin.f32 %v16, %v17
  %s19 = vtos %v18
  %v20 = vmax.f32 %v8, %v9
  %21 = vmax.xlane.f32.xlu0 %v20
  %v22 = vpop.xlane.xlu0 %21
  %v23 = vrot.slane %v22, 4
  %v24 = vmax.f32 %v22, %v23
  %v25 = vrot.slane %v24, 2
  %v26 = vmax.f32 %v24, %v25
  %v27 = vrot.slane %v26, 1
  %v28 = vmax.f32 %v26, %v27
  %s29 = vtos %v28
  %s30 = ssub.f32 %s19, 1e-08
  %s31 = sadd.f32 %s29, 1e-08
  %s32 = ssub.f32 %s31, %s30
  %v33 = vstv %s32
  %v34 = vrcp.pop %v33
  %v35 = vmul.f32 %v33, %v34
  %v36 = vsub.f32 1.0, %v35
  %v37 = vmul.f32 %v34, %v36
  %v38 = vadd.f32 %v34, %v37
  %vm39 = vweird.f32 %v33
  %vm40 = vweird.f32 %v34
  %vm41 = vmor %vm39, %vm40
  %v42 = vsel %vm41, %v34, %v38
  %v43 = vand.u32 2147483647, %v33
  %vm44 = vcmp.eq.f32.partialorder %v43, 8.507059e+37
  %v45 = vand.u32 %v33, 2147483648
  %v46 = vor.u32 1.1754944e-38, %v45
  %v47 = vsel %vm44, %v46, %v42
  %s48 = vtos %v47
  %s49 = smul.f32 255.0, %s48
  %v50 = vrcp.pop 255.0
  %v51 = vmul.f32 255.0, %v50
  %v52 = vsub.f32 1.0, %v51
  %v53 = vmul.f32 %v50, %v52
  %v54 = vadd.f32 %v50, %v53
  %vm55 = vweird.f32 %v50
  %v56 = vsel %vm55, %v50, %v54
  %s57 = vtos %v56
  %s58 = smul.f32 %s32, %s57
  %v59 = vstv %s30
  %v60 = vsub.f32 %v8, %v59
  %v61 = vsub.f32 %v9, %v59
  %v62 = vstv %s49
  %v63 = vmul.f32 %v60, %v62
  %v64 = vmul.f32 %v61, %v62
  %v65 = vmax.f32 %v63, 0.0
  %v66 = vmax.f32 %v64, 0.0
  %v67 = vmin.f32 %v65, 255.0
  %v68 = vmin.f32 %v66, 255.0
  %v69 = vround.ne.pseudo %v67
  %v70 = vround.ne.pseudo %v68
  %v71 = vstv %s58
  %v72 = vmul.f32 %v69, %v71
  %v73 = vmul.f32 %v70, %v71
  %v74 = vadd.f32 %v72, %v59
  %v75 = vadd.f32 %v73, %v59
  %76 = vst [vmem:[%s1] sm:$0xff] %v74
  %77 = vst [vmem:[%s1 + $0x8] sm:$0xff] %v75
  // Predicated region
  $region6: #{quant_measure.1} parent=0 // pred_check
    _
  $region7: #{quant_measure.1} parent=0 // pred_check_branch
    %79 = sbr.rel (0) target = $region9
  $region8: #{quant_measure.1} parent=0 // pred_region
    _
  $region9: #{quant_measure.1} parent=0 // pred_fallthru
    _
  // Predicated region
  $region10: #{quant_measure.1} parent=0 // pred_check
    _
  $region11: #{quant_measure.1} parent=0 // pred_check_branch
    %81 = sbr.rel (0) target = $region13
  $region12: #{quant_measure.1} parent=0 // pred_region
    _
  $region13: #{quant_measure.1} parent=0 // pred_fallthru
    _

</llo_original>
